<compile_context>
chip_gen: v5e
topology: v5e:2x2
jax: 0.10.0
libtpu: 0.0.40
codegen_flags: <defaults>
</compile_context>

<pallas_src>
import jax
import jax.numpy as jnp
from jax.experimental import pallas as pl
from jax.experimental.pallas import tpu as pltpu


def lstm_classifier_kernel(x_ref, wih_ref, whh_ref, b_ref, wfc_ref, bfc_ref,
                           out_ref):
    """Whole sequence in one invocation; all operands resident in VMEM.

    x_ref: (T*B, I) time-major rows, row index = t*B + b.
    wih/whh/b have the i/f/o gate columns pre-scaled by 0.5 (sigmoid-via-tanh).
    """
    TB = x_ref.shape[0]
    H = whh_ref.shape[0]
    G = 4 * H
    B = out_ref.shape[0]
    T = TB // B

    # --- Hoisted input projection: ONE large MXU matmul + single bias add. ---
    # Kept as a live value (8 vregs at these shapes) -- no VMEM scratch trip.
    gx = (jnp.dot(x_ref[...], wih_ref[...], preferred_element_type=jnp.float32)
          + b_ref[...])                                               # (T*B, 4H)

    whh = whh_ref[...]  # (H, 4H), loaded once

    # Lane-constant affine fixup built once (hoisted out of the loop):
    #   g lanes  [2H,3H):  act = tanh(z)          -> scale 1.0, shift 0.0
    #   i/f/o lanes:       act = 0.5*tanh(z/2)+0.5 -> scale 0.5, shift 0.5
    lane = jax.lax.broadcasted_iota(jnp.int32, (B, G), 1)
    is_g = jnp.logical_and(lane >= 2 * H, lane < 3 * H)
    post_scale = jnp.where(is_g, 1.0, 0.5).astype(jnp.float32)
    post_shift = jnp.where(is_g, 0.0, 0.5).astype(jnp.float32)

    h = jnp.zeros((B, H), jnp.float32)
    c = jnp.zeros((B, H), jnp.float32)

    # T is small & static -> fully unrolled recurrence. Per step: one small
    # (B,H)x(H,4H) MXU matmul + ONE tanh + a lane-constant affine + VPU work.
    for t in range(T):
        # Contiguous, tile-aligned (B, 4H) block for timestep t (time-major).
        gx_t = gx[t * B:(t + 1) * B, :]
        z = gx_t + jnp.dot(h, whh, preferred_element_type=jnp.float32)
        act = jnp.tanh(z) * post_scale + post_shift
        i_g = act[:, 0 * H:1 * H]
        f_g = act[:, 1 * H:2 * H]
        g_g = act[:, 2 * H:3 * H]
        o_g = act[:, 3 * H:4 * H]
        c = f_g * c + i_g * g_g
        h = o_g * jnp.tanh(c)

    logits = (jnp.dot(h, wfc_ref[...], preferred_element_type=jnp.float32)
              + bfc_ref[...])
    out_ref[...] = jax.nn.sigmoid(logits)


def prepare_params(w_ih, w_hh, b_ih, b_hh, w_fc, b_fc):
    """One-time weight layout prep (outside the jitted hot path).

    Transposes to MXU-friendly layouts, sums the two LSTM biases, and folds
    the 0.5 sigmoid-via-tanh pre-scale into the i/f/o gate columns.
    """
    H = w_hh.shape[1]
    O = w_fc.shape[0]
    # Gate order [i, f, g, o]: 0.5 on sigmoid gates, 1.0 on the tanh (g) gate.
    pre = jnp.concatenate([
        jnp.full((H,), 0.5, jnp.float32),
        jnp.full((H,), 0.5, jnp.float32),
        jnp.ones((H,), jnp.float32),
        jnp.full((H,), 0.5, jnp.float32),
    ])
    wih_t = jnp.transpose(w_ih).astype(jnp.float32) * pre[None, :]   # (I, 4H)
    whh_t = jnp.transpose(w_hh).astype(jnp.float32) * pre[None, :]   # (H, 4H)
    b = ((b_ih + b_hh).astype(jnp.float32) * pre).reshape(1, 4 * H)  # (1, 4H)
    wfc_t = jnp.transpose(w_fc).astype(jnp.float32)                  # (H, O)
    bfc = b_fc.reshape(1, O).astype(jnp.float32)                     # (1, O)
    return wih_t, whh_t, b, wfc_t, bfc


@jax.jit
def lstm_classifier_forward(x_btI, wih_t, whh_t, b, wfc_t, bfc):
    """x_btI: (B, T, I) like PyTorch batch_first LSTM input; weights prepped."""
    B, T, I = x_btI.shape
    O = wfc_t.shape[1]

    # Time-major rows (row = t*B + b) so each recurrence step reads one
    # contiguous, tile-aligned (B, 4H) block. x is ~4 KB; this transpose is
    # noise (the "no wrapper transpose" rule is about HBM-scale extra passes).
    x_tb = jnp.transpose(x_btI, (1, 0, 2)).reshape(T * B, I).astype(jnp.float32)

    vmem = pl.BlockSpec(memory_space=pltpu.MemorySpace.VMEM)
    return pl.pallas_call(
        lstm_classifier_kernel,
        out_shape=jax.ShapeDtypeStruct((B, O), jnp.float32),
        in_specs=[vmem] * 6,
        out_specs=vmem,
    )(x_tb, wih_t, whh_t, b, wfc_t, bfc)


def _reference_forward(x_btI, w_ih, w_hh, b_ih, b_hh, w_fc, b_fc):
    """Pure-JAX reference matching torch.nn.LSTM(batch_first=True) + Linear + Sigmoid."""
    B, T, I = x_btI.shape
    H = w_hh.shape[1]
    h = jnp.zeros((B, H), jnp.float32)
    c = jnp.zeros((B, H), jnp.float32)
    for t in range(T):
        x_t = x_btI[:, t, :]
        gates = x_t @ w_ih.T + b_ih + h @ w_hh.T + b_hh
        i_g = jax.nn.sigmoid(gates[:, 0 * H:1 * H])
        f_g = jax.nn.sigmoid(gates[:, 1 * H:2 * H])
        g_g = jnp.tanh(gates[:, 2 * H:3 * H])
        o_g = jax.nn.sigmoid(gates[:, 3 * H:4 * H])
        c = f_g * c + i_g * g_g
        h = o_g * jnp.tanh(c)
    return jax.nn.sigmoid(h @ w_fc.T + b_fc)


if __name__ == "__main__":
    # Small shapes consistent with the module's forward:
    #   x: (B, T, input_size); LSTM hidden_size H (4H = 128 -> lane-dense gates);
    #   fc: H -> output_size.
    B, T, I, H, O = 8, 8, 16, 32, 4

    key = jax.random.PRNGKey(0)
    keys = jax.random.split(key, 8)

    # Deterministic parameter init (PyTorch-style uniform(-1/sqrt(H), 1/sqrt(H))).
    bound = 1.0 / jnp.sqrt(jnp.float32(H))
    w_ih = jax.random.uniform(keys[0], (4 * H, I), jnp.float32, -bound, bound)
    w_hh = jax.random.uniform(keys[1], (4 * H, H), jnp.float32, -bound, bound)
    b_ih = jax.random.uniform(keys[2], (4 * H,), jnp.float32, -bound, bound)
    b_hh = jax.random.uniform(keys[3], (4 * H,), jnp.float32, -bound, bound)
    w_fc = jax.random.uniform(keys[4], (O, H), jnp.float32, -bound, bound)
    b_fc = jax.random.uniform(keys[5], (O,), jnp.float32, -bound, bound)

    x = jax.random.normal(keys[6], (B, T, I), jnp.float32)

    # One-time weight prep, outside the jitted forward.
    params = prepare_params(w_ih, w_hh, b_ih, b_hh, w_fc, b_fc)

    out = lstm_classifier_forward(x, *params)
    out = jax.block_until_ready(out)

    ref = _reference_forward(x, w_ih, w_hh, b_ih, b_hh, w_fc, b_fc)
    assert out.shape == (B, O), out.shape
    assert jnp.allclose(out, ref, atol=1e-5, rtol=1e-5), "mismatch vs reference"

    print("KERNEL_OK")
</pallas_src>

<mosaic_0001>
module attributes {stable_mosaic.version = 11 : i64} {
  func.func @lstm_classifier_kernel(%arg0: memref<64x16xf32, #tpu.memory_space<vmem>>, %arg1: memref<16x128xf32, #tpu.memory_space<vmem>>, %arg2: memref<32x128xf32, #tpu.memory_space<vmem>>, %arg3: memref<1x128xf32, #tpu.memory_space<vmem>>, %arg4: memref<32x4xf32, #tpu.memory_space<vmem>>, %arg5: memref<1x4xf32, #tpu.memory_space<vmem>>, %arg6: memref<8x4xf32, #tpu.memory_space<vmem>>) attributes {dimension_semantics = [], scalar_prefetch = 0 : i64, scratch_operands = 0 : i64, tpu.core_type = #tpu.core_type<tc>} {
    %c0 = arith.constant 0 : index
    %c0_0 = arith.constant 0 : index
    %0 = vector.load %arg0[%c0, %c0_0] : memref<64x16xf32, #tpu.memory_space<vmem>>, vector<64x16xf32>
    %c0_1 = arith.constant 0 : index
    %c0_2 = arith.constant 0 : index
    %1 = vector.load %arg1[%c0_1, %c0_2] : memref<16x128xf32, #tpu.memory_space<vmem>>, vector<16x128xf32>
    %cst = arith.constant dense<0.000000e+00> : vector<64x128xf32>
    %2 = tpu.matmul %0, %1, %cst {dimension_numbers = #tpu.dot_dimension_numbers<[1], [0], [0], [1], [0, 0, 1, 1], [], []>} : vector<64x16xf32>, vector<16x128xf32>, vector<64x128xf32> -> vector<64x128xf32>
    %c0_3 = arith.constant 0 : index
    %c0_4 = arith.constant 0 : index
    %3 = vector.load %arg3[%c0_3, %c0_4] : memref<1x128xf32, #tpu.memory_space<vmem>>, vector<1x128xf32>
    %4 = vector.broadcast %3 : vector<1x128xf32> to vector<64x128xf32>
    %5 = arith.addf %2, %4 : vector<64x128xf32>
    %c0_5 = arith.constant 0 : index
    %c0_6 = arith.constant 0 : index
    %6 = vector.load %arg2[%c0_5, %c0_6] : memref<32x128xf32, #tpu.memory_space<vmem>>, vector<32x128xf32>
    %7 = tpu.iota {dimensions = array<i32: 1>} : vector<8x128xi32>
    %c64_i32 = arith.constant 64 : i32
    %8 = vector.broadcast %c64_i32 : i32 to vector<8x128xi32>
    %9 = arith.cmpi sge, %7, %8 : vector<8x128xi32>
    %c96_i32 = arith.constant 96 : i32
    %10 = vector.broadcast %c96_i32 : i32 to vector<8x128xi32>
    %11 = arith.cmpi slt, %7, %10 : vector<8x128xi32>
    %12 = arith.andi %9, %11 : vector<8x128xi1>
    %cst_7 = arith.constant 1.000000e+00 : f32
    %cst_8 = arith.constant 5.000000e-01 : f32
    %13 = vector.broadcast %cst_7 : f32 to vector<8x128xf32>
    %14 = vector.broadcast %cst_8 : f32 to vector<8x128xf32>
    %15 = arith.select %12, %13, %14 : vector<8x128xi1>, vector<8x128xf32>
    %cst_9 = arith.constant 0.000000e+00 : f32
    %cst_10 = arith.constant 5.000000e-01 : f32
    %16 = vector.broadcast %cst_9 : f32 to vector<8x128xf32>
    %17 = vector.broadcast %cst_10 : f32 to vector<8x128xf32>
    %18 = arith.select %12, %16, %17 : vector<8x128xi1>, vector<8x128xf32>
    %cst_11 = arith.constant 0.000000e+00 : f32
    %19 = vector.broadcast %cst_11 : f32 to vector<8x32xf32>
    %cst_12 = arith.constant 0.000000e+00 : f32
    %20 = vector.broadcast %cst_12 : f32 to vector<8x32xf32>
    %21 = vector.extract_strided_slice %5 {offsets = [0, 0], sizes = [8, 128], strides = [1, 1]} : vector<64x128xf32> to vector<8x128xf32>
    %cst_13 = arith.constant dense<0.000000e+00> : vector<8x128xf32>
    %22 = tpu.matmul %19, %6, %cst_13 {dimension_numbers = #tpu.dot_dimension_numbers<[1], [0], [0], [1], [0, 0, 1, 1], [], []>} : vector<8x32xf32>, vector<32x128xf32>, vector<8x128xf32> -> vector<8x128xf32>
    %23 = arith.addf %21, %22 : vector<8x128xf32>
    %24 = math.tanh %23 : vector<8x128xf32>
    %25 = arith.mulf %24, %15 : vector<8x128xf32>
    %26 = arith.addf %25, %18 : vector<8x128xf32>
    %27 = vector.extract_strided_slice %26 {offsets = [0, 0], sizes = [8, 32], strides = [1, 1]} : vector<8x128xf32> to vector<8x32xf32>
    %28 = vector.extract_strided_slice %26 {offsets = [0, 32], sizes = [8, 32], strides = [1, 1]} : vector<8x128xf32> to vector<8x32xf32>
    %29 = vector.extract_strided_slice %26 {offsets = [0, 64], sizes = [8, 32], strides = [1, 1]} : vector<8x128xf32> to vector<8x32xf32>
    %30 = vector.extract_strided_slice %26 {offsets = [0, 96], sizes = [8, 32], strides = [1, 1]} : vector<8x128xf32> to vector<8x32xf32>
    %31 = arith.mulf %28, %20 : vector<8x32xf32>
    %32 = arith.mulf %27, %29 : vector<8x32xf32>
    %33 = arith.addf %31, %32 : vector<8x32xf32>
    %34 = math.tanh %33 : vector<8x32xf32>
    %35 = arith.mulf %30, %34 : vector<8x32xf32>
    %36 = vector.extract_strided_slice %5 {offsets = [8, 0], sizes = [8, 128], strides = [1, 1]} : vector<64x128xf32> to vector<8x128xf32>
    %cst_14 = arith.constant dense<0.000000e+00> : vector<8x128xf32>
    %37 = tpu.matmul %35, %6, %cst_14 {dimension_numbers = #tpu.dot_dimension_numbers<[1], [0], [0], [1], [0, 0, 1, 1], [], []>} : vector<8x32xf32>, vector<32x128xf32>, vector<8x128xf32> -> vector<8x128xf32>
    %38 = arith.addf %36, %37 : vector<8x128xf32>
    %39 = math.tanh %38 : vector<8x128xf32>
    %40 = arith.mulf %39, %15 : vector<8x128xf32>
    %41 = arith.addf %40, %18 : vector<8x128xf32>
    %42 = vector.extract_strided_slice %41 {offsets = [0, 0], sizes = [8, 32], strides = [1, 1]} : vector<8x128xf32> to vector<8x32xf32>
    %43 = vector.extract_strided_slice %41 {offsets = [0, 32], sizes = [8, 32], strides = [1, 1]} : vector<8x128xf32> to vector<8x32xf32>
    %44 = vector.extract_strided_slice %41 {offsets = [0, 64], sizes = [8, 32], strides = [1, 1]} : vector<8x128xf32> to vector<8x32xf32>
    %45 = vector.extract_strided_slice %41 {offsets = [0, 96], sizes = [8, 32], strides = [1, 1]} : vector<8x128xf32> to vector<8x32xf32>
    %46 = arith.mulf %43, %33 : vector<8x32xf32>
    %47 = arith.mulf %42, %44 : vector<8x32xf32>
    %48 = arith.addf %46, %47 : vector<8x32xf32>
    %49 = math.tanh %48 : vector<8x32xf32>
    %50 = arith.mulf %45, %49 : vector<8x32xf32>
    %51 = vector.extract_strided_slice %5 {offsets = [16, 0], sizes = [8, 128], strides = [1, 1]} : vector<64x128xf32> to vector<8x128xf32>
    %cst_15 = arith.constant dense<0.000000e+00> : vector<8x128xf32>
    %52 = tpu.matmul %50, %6, %cst_15 {dimension_numbers = #tpu.dot_dimension_numbers<[1], [0], [0], [1], [0, 0, 1, 1], [], []>} : vector<8x32xf32>, vector<32x128xf32>, vector<8x128xf32> -> vector<8x128xf32>
    %53 = arith.addf %51, %52 : vector<8x128xf32>
    %54 = math.tanh %53 : vector<8x128xf32>
    %55 = arith.mulf %54, %15 : vector<8x128xf32>
    %56 = arith.addf %55, %18 : vector<8x128xf32>
    %57 = vector.extract_strided_slice %56 {offsets = [0, 0], sizes = [8, 32], strides = [1, 1]} : vector<8x128xf32> to vector<8x32xf32>
    %58 = vector.extract_strided_slice %56 {offsets = [0, 32], sizes = [8, 32], strides = [1, 1]} : vector<8x128xf32> to vector<8x32xf32>
    %59 = vector.extract_strided_slice %56 {offsets = [0, 64], sizes = [8, 32], strides = [1, 1]} : vector<8x128xf32> to vector<8x32xf32>
    %60 = vector.extract_strided_slice %56 {offsets = [0, 96], sizes = [8, 32], strides = [1, 1]} : vector<8x128xf32> to vector<8x32xf32>
    %61 = arith.mulf %58, %48 : vector<8x32xf32>
    %62 = arith.mulf %57, %59 : vector<8x32xf32>
    %63 = arith.addf %61, %62 : vector<8x32xf32>
    %64 = math.tanh %63 : vector<8x32xf32>
    %65 = arith.mulf %60, %64 : vector<8x32xf32>
    %66 = vector.extract_strided_slice %5 {offsets = [24, 0], sizes = [8, 128], strides = [1, 1]} : vector<64x128xf32> to vector<8x128xf32>
    %cst_16 = arith.constant dense<0.000000e+00> : vector<8x128xf32>
    %67 = tpu.matmul %65, %6, %cst_16 {dimension_numbers = #tpu.dot_dimension_numbers<[1], [0], [0], [1], [0, 0, 1, 1], [], []>} : vector<8x32xf32>, vector<32x128xf32>, vector<8x128xf32> -> vector<8x128xf32>
    %68 = arith.addf %66, %67 : vector<8x128xf32>
    %69 = math.tanh %68 : vector<8x128xf32>
    %70 = arith.mulf %69, %15 : vector<8x128xf32>
    %71 = arith.addf %70, %18 : vector<8x128xf32>
    %72 = vector.extract_strided_slice %71 {offsets = [0, 0], sizes = [8, 32], strides = [1, 1]} : vector<8x128xf32> to vector<8x32xf32>
    %73 = vector.extract_strided_slice %71 {offsets = [0, 32], sizes = [8, 32], strides = [1, 1]} : vector<8x128xf32> to vector<8x32xf32>
    %74 = vector.extract_strided_slice %71 {offsets = [0, 64], sizes = [8, 32], strides = [1, 1]} : vector<8x128xf32> to vector<8x32xf32>
    %75 = vector.extract_strided_slice %71 {offsets = [0, 96], sizes = [8, 32], strides = [1, 1]} : vector<8x128xf32> to vector<8x32xf32>
    %76 = arith.mulf %73, %63 : vector<8x32xf32>
    %77 = arith.mulf %72, %74 : vector<8x32xf32>
    %78 = arith.addf %76, %77 : vector<8x32xf32>
    %79 = math.tanh %78 : vector<8x32xf32>
    %80 = arith.mulf %75, %79 : vector<8x32xf32>
    %81 = vector.extract_strided_slice %5 {offsets = [32, 0], sizes = [8, 128], strides = [1, 1]} : vector<64x128xf32> to vector<8x128xf32>
    %cst_17 = arith.constant dense<0.000000e+00> : vector<8x128xf32>
    %82 = tpu.matmul %80, %6, %cst_17 {dimension_numbers = #tpu.dot_dimension_numbers<[1], [0], [0], [1], [0, 0, 1, 1], [], []>} : vector<8x32xf32>, vector<32x128xf32>, vector<8x128xf32> -> vector<8x128xf32>
    %83 = arith.addf %81, %82 : vector<8x128xf32>
    %84 = math.tanh %83 : vector<8x128xf32>
    %85 = arith.mulf %84, %15 : vector<8x128xf32>
    %86 = arith.addf %85, %18 : vector<8x128xf32>
    %87 = vector.extract_strided_slice %86 {offsets = [0, 0], sizes = [8, 32], strides = [1, 1]} : vector<8x128xf32> to vector<8x32xf32>
    %88 = vector.extract_strided_slice %86 {offsets = [0, 32], sizes = [8, 32], strides = [1, 1]} : vector<8x128xf32> to vector<8x32xf32>
    %89 = vector.extract_strided_slice %86 {offsets = [0, 64], sizes = [8, 32], strides = [1, 1]} : vector<8x128xf32> to vector<8x32xf32>
    %90 = vector.extract_strided_slice %86 {offsets = [0, 96], sizes = [8, 32], strides = [1, 1]} : vector<8x128xf32> to vector<8x32xf32>
    %91 = arith.mulf %88, %78 : vector<8x32xf32>
    %92 = arith.mulf %87, %89 : vector<8x32xf32>
    %93 = arith.addf %91, %92 : vector<8x32xf32>
    %94 = math.tanh %93 : vector<8x32xf32>
    %95 = arith.mulf %90, %94 : vector<8x32xf32>
    %96 = vector.extract_strided_slice %5 {offsets = [40, 0], sizes = [8, 128], strides = [1, 1]} : vector<64x128xf32> to vector<8x128xf32>
    %cst_18 = arith.constant dense<0.000000e+00> : vector<8x128xf32>
    %97 = tpu.matmul %95, %6, %cst_18 {dimension_numbers = #tpu.dot_dimension_numbers<[1], [0], [0], [1], [0, 0, 1, 1], [], []>} : vector<8x32xf32>, vector<32x128xf32>, vector<8x128xf32> -> vector<8x128xf32>
    %98 = arith.addf %96, %97 : vector<8x128xf32>
    %99 = math.tanh %98 : vector<8x128xf32>
    %100 = arith.mulf %99, %15 : vector<8x128xf32>
    %101 = arith.addf %100, %18 : vector<8x128xf32>
    %102 = vector.extract_strided_slice %101 {offsets = [0, 0], sizes = [8, 32], strides = [1, 1]} : vector<8x128xf32> to vector<8x32xf32>
    %103 = vector.extract_strided_slice %101 {offsets = [0, 32], sizes = [8, 32], strides = [1, 1]} : vector<8x128xf32> to vector<8x32xf32>
    %104 = vector.extract_strided_slice %101 {offsets = [0, 64], sizes = [8, 32], strides = [1, 1]} : vector<8x128xf32> to vector<8x32xf32>
    %105 = vector.extract_strided_slice %101 {offsets = [0, 96], sizes = [8, 32], strides = [1, 1]} : vector<8x128xf32> to vector<8x32xf32>
    %106 = arith.mulf %103, %93 : vector<8x32xf32>
    %107 = arith.mulf %102, %104 : vector<8x32xf32>
    %108 = arith.addf %106, %107 : vector<8x32xf32>
    %109 = math.tanh %108 : vector<8x32xf32>
    %110 = arith.mulf %105, %109 : vector<8x32xf32>
    %111 = vector.extract_strided_slice %5 {offsets = [48, 0], sizes = [8, 128], strides = [1, 1]} : vector<64x128xf32> to vector<8x128xf32>
    %cst_19 = arith.constant dense<0.000000e+00> : vector<8x128xf32>
    %112 = tpu.matmul %110, %6, %cst_19 {dimension_numbers = #tpu.dot_dimension_numbers<[1], [0], [0], [1], [0, 0, 1, 1], [], []>} : vector<8x32xf32>, vector<32x128xf32>, vector<8x128xf32> -> vector<8x128xf32>
    %113 = arith.addf %111, %112 : vector<8x128xf32>
    %114 = math.tanh %113 : vector<8x128xf32>
    %115 = arith.mulf %114, %15 : vector<8x128xf32>
    %116 = arith.addf %115, %18 : vector<8x128xf32>
    %117 = vector.extract_strided_slice %116 {offsets = [0, 0], sizes = [8, 32], strides = [1, 1]} : vector<8x128xf32> to vector<8x32xf32>
    %118 = vector.extract_strided_slice %116 {offsets = [0, 32], sizes = [8, 32], strides = [1, 1]} : vector<8x128xf32> to vector<8x32xf32>
    %119 = vector.extract_strided_slice %116 {offsets = [0, 64], sizes = [8, 32], strides = [1, 1]} : vector<8x128xf32> to vector<8x32xf32>
    %120 = vector.extract_strided_slice %116 {offsets = [0, 96], sizes = [8, 32], strides = [1, 1]} : vector<8x128xf32> to vector<8x32xf32>
    %121 = arith.mulf %118, %108 : vector<8x32xf32>
    %122 = arith.mulf %117, %119 : vector<8x32xf32>
    %123 = arith.addf %121, %122 : vector<8x32xf32>
    %124 = math.tanh %123 : vector<8x32xf32>
    %125 = arith.mulf %120, %124 : vector<8x32xf32>
    %126 = vector.extract_strided_slice %5 {offsets = [56, 0], sizes = [8, 128], strides = [1, 1]} : vector<64x128xf32> to vector<8x128xf32>
    %cst_20 = arith.constant dense<0.000000e+00> : vector<8x128xf32>
    %127 = tpu.matmul %125, %6, %cst_20 {dimension_numbers = #tpu.dot_dimension_numbers<[1], [0], [0], [1], [0, 0, 1, 1], [], []>} : vector<8x32xf32>, vector<32x128xf32>, vector<8x128xf32> -> vector<8x128xf32>
    %128 = arith.addf %126, %127 : vector<8x128xf32>
    %129 = math.tanh %128 : vector<8x128xf32>
    %130 = arith.mulf %129, %15 : vector<8x128xf32>
    %131 = arith.addf %130, %18 : vector<8x128xf32>
    %132 = vector.extract_strided_slice %131 {offsets = [0, 0], sizes = [8, 32], strides = [1, 1]} : vector<8x128xf32> to vector<8x32xf32>
    %133 = vector.extract_strided_slice %131 {offsets = [0, 32], sizes = [8, 32], strides = [1, 1]} : vector<8x128xf32> to vector<8x32xf32>
    %134 = vector.extract_strided_slice %131 {offsets = [0, 64], sizes = [8, 32], strides = [1, 1]} : vector<8x128xf32> to vector<8x32xf32>
    %135 = vector.extract_strided_slice %131 {offsets = [0, 96], sizes = [8, 32], strides = [1, 1]} : vector<8x128xf32> to vector<8x32xf32>
    %136 = arith.mulf %133, %123 : vector<8x32xf32>
    %137 = arith.mulf %132, %134 : vector<8x32xf32>
    %138 = arith.addf %136, %137 : vector<8x32xf32>
    %139 = math.tanh %138 : vector<8x32xf32>
    %140 = arith.mulf %135, %139 : vector<8x32xf32>
    %c0_21 = arith.constant 0 : index
    %c0_22 = arith.constant 0 : index
    %141 = vector.load %arg4[%c0_21, %c0_22] : memref<32x4xf32, #tpu.memory_space<vmem>>, vector<32x4xf32>
    %cst_23 = arith.constant dense<0.000000e+00> : vector<8x4xf32>
    %142 = tpu.matmul %140, %141, %cst_23 {dimension_numbers = #tpu.dot_dimension_numbers<[1], [0], [0], [1], [0, 0, 1, 1], [], []>} : vector<8x32xf32>, vector<32x4xf32>, vector<8x4xf32> -> vector<8x4xf32>
    %c0_24 = arith.constant 0 : index
    %c0_25 = arith.constant 0 : index
    %143 = vector.load %arg5[%c0_24, %c0_25] : memref<1x4xf32, #tpu.memory_space<vmem>>, vector<1x4xf32>
    %144 = vector.broadcast %143 : vector<1x4xf32> to vector<8x4xf32>
    %145 = arith.addf %142, %144 : vector<8x4xf32>
    %146 = arith.negf %145 : vector<8x4xf32>
    %147 = math.exp %146 : vector<8x4xf32>
    %cst_26 = arith.constant 1.000000e+00 : f32
    %148 = vector.broadcast %cst_26 : f32 to vector<8x4xf32>
    %149 = arith.addf %148, %147 : vector<8x4xf32>
    %150 = arith.divf %148, %149 : vector<8x4xf32>
    %c0_27 = arith.constant 0 : index
    %c0_28 = arith.constant 0 : index
    %151 = vector.load %arg6[%c0_27, %c0_28] : memref<8x4xf32, #tpu.memory_space<vmem>>, vector<8x4xf32>
    tpu.vector_store %arg6[%c0_27, %c0_28], %150 {strides = array<i32>} : memref<8x4xf32, #tpu.memory_space<vmem>>, vector<8x4xf32>,
    return
  }
}

</mosaic_0001>

<llo_original>
// kernel: lstm_classifier_forward.1
$region0: #{lstm_classifier_forward.1}
  #allocation0 [shape = 'u32[]', space=smem, size = 0x4, offset = 0x4, fixed_abs, tag = 'smem constant byte address 0x4 - core index']
  #allocation1 [shape = 'u32[72,128]{1,0:T(1,128)}', space=vmem, size = 0x9000, scoped, tag = 'internal scratch']
  %s0 = inlined_call_operand.vmem [shape: f32[64,16], index: 0, kind: input, shape index: {}]
  %s1 = inlined_call_operand.vmem [shape: f32[16,128], index: 1, kind: input, shape index: {}]
  %s2 = inlined_call_operand.vmem [shape: f32[32,128], index: 2, kind: input, shape index: {}]
  %s3 = inlined_call_operand.vmem [shape: f32[1,128], index: 3, kind: input, shape index: {}]
  %s4 = inlined_call_operand.vmem [shape: f32[32,4], index: 4, kind: input, shape index: {}]
  %s5 = inlined_call_operand.vmem [shape: f32[1,4], index: 5, kind: input, shape index: {}]
  %s6 = inlined_call_operand.vmem [shape: f32[8,4], index: 6, kind: output, shape index: {}]
  %s7 = sld [smem:[#allocation0]]
  $region34: #{lstm_classifier_forward.1} parent=0
    _
  %s9 = ssub.s32 1, %s7
  %s10 = scalar_select 0, %s9, %s7
  // Predicated region
  $region2: #{lstm_classifier_forward.1} parent=0 // pred_check
    _
  $region3: #{lstm_classifier_forward.1} parent=0 // pred_check_branch
    %12 = sbr.rel (0) target = $region5
  $region4: #{lstm_classifier_forward.1} parent=0 // pred_region
    _
  $region5: #{lstm_classifier_forward.1} parent=0 // pred_fallthru
    _
  // Predicated region
  $region6: #{lstm_classifier_forward.1} parent=0 // pred_check
    _
  $region7: #{lstm_classifier_forward.1} parent=0 // pred_check_branch
    %14 = sbr.rel (0) target = $region9
  $region8: #{lstm_classifier_forward.1} parent=0 // pred_region
    _
  $region9: #{lstm_classifier_forward.1} parent=0 // pred_fallthru
    _
  // Predicated region
  $region10: #{lstm_classifier_forward.1} parent=0 // pred_check
    _
  $region11: #{lstm_classifier_forward.1} parent=0 // pred_check_branch
    %16 = sbr.rel (0) target = $region13
  $region12: #{lstm_classifier_forward.1} parent=0 // pred_region
    _
  $region13: #{lstm_classifier_forward.1} parent=0 // pred_fallthru
    _
  // Predicated region
  $region14: #{lstm_classifier_forward.1} parent=0 // pred_check
    _
  $region15: #{lstm_classifier_forward.1} parent=0 // pred_check_branch
    %18 = sbr.rel (0) target = $region17
  $region16: #{lstm_classifier_forward.1} parent=0 // pred_region
    _
  $region17: #{lstm_classifier_forward.1} parent=0 // pred_fallthru
    _
  // Predicated region
  $region18: #{lstm_classifier_forward.1} parent=0 // pred_check
    _
  $region19: #{lstm_classifier_forward.1} parent=0 // pred_check_branch
    %20 = sbr.rel (0) target = $region21
  $region20: #{lstm_classifier_forward.1} parent=0 // pred_region
    _
  $region21: #{lstm_classifier_forward.1} parent=0 // pred_fallthru
    _
  // Predicated region
  $region22: #{lstm_classifier_forward.1} parent=0 // pred_check
    _
  $region23: #{lstm_classifier_forward.1} parent=0 // pred_check_branch
    %22 = sbr.rel (0) target = $region25
  $region24: #{lstm_classifier_forward.1} parent=0 // pred_region
    _
  $region25: #{lstm_classifier_forward.1} parent=0 // pred_fallthru
    _
  %v23 = vld [vmem:[%s0] sm:$0xff]
  %v24 = vld [vmem:[%s0 + $0x8] sm:$0xff]
  %v25 = vld [vmem:[%s0 + $0x10] sm:$0xff]
  %v26 = vld [vmem:[%s0 + $0x18] sm:$0xff]
  %v27 = vld [vmem:[%s0 + $0x20] sm:$0xff]
  %v28 = vld [vmem:[%s0 + $0x28] sm:$0xff]
  %v29 = vld [vmem:[%s0 + $0x30] sm:$0xff]
  %v30 = vld [vmem:[%s0 + $0x38] sm:$0xff]
  %v31 = vld [vmem:[%s1] sm:$0xff]
  %v32 = vld [vmem:[%s1 + $0x8] sm:$0xff]
  %v33 = vld [vmem:[%s3] sm:$0x1]
  %v35 = vperm.slane %v33, 0
  %vm37 = vcmask 130048
  %v39 = vsel %vm37, %v23, 0
  %v42 = vsel %vm37, %v24, 0
  %v45 = vsel %vm37, %v25, 0
  %v48 = vsel %vm37, %v26, 0
  %v51 = vsel %vm37, %v27, 0
  %v54 = vsel %vm37, %v28, 0
  %v57 = vsel %vm37, %v29, 0
  %v60 = vsel %vm37, %v30, 0
  %62 = vmatpush.msra.mxu0 0.0
  %63 = vmatpush.msra.mxu0 0.0
  %64 = vmatpush.msra.mxu0 0.0
  %65 = vmatpush.msra.mxu0 0.0
  %66 = vmatpush.msra.mxu0 0.0
  %67 = vmatpush.msra.mxu0 0.0
  %68 = vmatpush.msra.mxu0 0.0
  %69 = vmatpush.msra.mxu0 0.0
  %70 = vmatpush.msra.mxu0 0.0
  %71 = vmatpush.msra.mxu0 0.0
  %72 = vmatpush.msra.mxu0 0.0
  %73 = vmatpush.msra.mxu0 0.0
  %74 = vmatpush.msra.mxu0 0.0
  %75 = vmatpush.msra.mxu0 0.0
  %76 = vmatpush.msra.mxu0 %v32
  %77 = vmatpush.msra.mxu0 %v31
  %78 = vmatmul.f32.gmra.mxu0 %v39
  %v79 = vpop.f32.mrf.mxu0
  %v80 = vadd.f32 %v35, %v79
  %81 = vmatmul.f32.gmra.mxu0 %v42
  %v82 = vpop.f32.mrf.mxu0
  %v83 = vadd.f32 %v35, %v82
  %84 = vmatmul.f32.gmra.mxu0 %v45
  %v85 = vpop.f32.mrf.mxu0
  %v86 = vadd.f32 %v35, %v85
  %87 = vmatmul.f32.gmra.mxu0 %v48
  %v88 = vpop.f32.mrf.mxu0
  %v89 = vadd.f32 %v35, %v88
  %90 = vmatmul.f32.gmra.mxu0 %v51
  %v91 = vpop.f32.mrf.mxu0
  %v92 = vadd.f32 %v35, %v91
  %93 = vmatmul.f32.gmra.mxu0 %v54
  %v94 = vpop.f32.mrf.mxu0
  %v95 = vadd.f32 %v35, %v94
  %96 = vmatmul.f32.gmra.mxu0 %v57
  %v97 = vpop.f32.mrf.mxu0
  %v98 = vadd.f32 %v35, %v97
  %99 = vmatmul.f32.gmra.mxu0 %v60
  %v100 = vpop.f32.mrf.mxu0
  %v101 = vadd.f32 %v35, %v100
  %102 = vdwg.mxu0
  %v103 = vld [vmem:[%s2] sm:$0xff]
  %v104 = vld [vmem:[%s2 + $0x8] sm:$0xff]
  %v105 = vld [vmem:[%s2 + $0x10] sm:$0xff]
  %v106 = vld [vmem:[%s2 + $0x18] sm:$0xff]
  %v107 = vlaneseq
  %v108 = vand.u32 %v107, 127
  %vm109 = vcmp.ge.s32.totalorder %v108, 64
  %vm110 = vcmp.lt.s32.totalorder %v108, 96
  %vm111 = vmand %vm109, %vm110
  %v112 = vsel %vm111, 1.0, 0.5
  %v113 = vsel %vm111, 0.0, 0.5
  %vm114 = vcmask 261120
  %v116 = vsel %vm114, 0.0, 0
  %118 = vmatpush.msra.mxu0 0.0
  %119 = vmatpush.msra.mxu0 0.0
  %120 = vmatpush.msra.mxu0 0.0
  %121 = vmatpush.msra.mxu0 0.0
  %122 = vmatpush.msra.mxu0 0.0
  %123 = vmatpush.msra.mxu0 0.0
  %124 = vmatpush.msra.mxu0 0.0
  %125 = vmatpush.msra.mxu0 0.0
  %126 = vmatpush.msra.mxu0 0.0
  %127 = vmatpush.msra.mxu0 0.0
  %128 = vmatpush.msra.mxu0 0.0
  %129 = vmatpush.msra.mxu0 0.0
  %130 = vmatpush.msra.mxu0 %v106
  %131 = vmatpush.msra.mxu0 %v105
  %132 = vmatpush.msra.mxu0 %v104
  %133 = vmatpush.msra.mxu0 %v103
  %134 = vmatmul.f32.gmra.mxu0 %v116
  %v135 = vpop.f32.mrf.mxu0
  %v136 = vadd.f32 0.0, %v135
  %137 = vdwg.mxu0
  %v138 = vadd.f32 %v80, %v136
  %v139 = vtanh.pop %v138
  %v140 = vmul.f32 %v139, %v112
  %v141 = vadd.f32 %v140, %v113
  %v142 = vmul.f32 %v141, 0.0
  %144 = vrot.lane.b32.xlu0 %v141, 64
  %v145 = vpop.permute.xlu0 %144
  %v147 = vmul.f32 %v141, %v145
  %149 = vrot.lane.b32.xlu0 %v147, 32
  %v150 = vpop.permute.xlu0 %149
  %v152 = vadd.f32 %v142, %v150
  %v153 = vtanh.pop %v152
  %155 = vrot.lane.b32.xlu0 %v153, 64
  %v156 = vpop.permute.xlu0 %155
  %v158 = vmul.f32 %v141, %v156
  %160 = vrot.lane.b32.xlu0 %v158, 32
  %v161 = vpop.permute.xlu0 %160
  %v162 = vsel %vm114, %v161, 0
  %164 = vmatpush.msra.mxu0 0.0
  %165 = vmatpush.msra.mxu0 0.0
  %166 = vmatpush.msra.mxu0 0.0
  %167 = vmatpush.msra.mxu0 0.0
  %168 = vmatpush.msra.mxu0 0.0
  %169 = vmatpush.msra.mxu0 0.0
  %170 = vmatpush.msra.mxu0 0.0
  %171 = vmatpush.msra.mxu0 0.0
  %172 = vmatpush.msra.mxu0 0.0
  %173 = vmatpush.msra.mxu0 0.0
  %174 = vmatpush.msra.mxu0 0.0
  %175 = vmatpush.msra.mxu0 0.0
  %176 = vmatpush.msra.mxu0 %v106
  %177 = vmatpush.msra.mxu0 %v105
  %178 = vmatpush.msra.mxu0 %v104
  %179 = vmatpush.msra.mxu0 %v103
  %180 = vmatmul.f32.gmra.mxu0 %v162
  %v181 = vpop.f32.mrf.mxu0
  %v182 = vadd.f32 0.0, %v181
  %183 = vdwg.mxu0
  %v184 = vadd.f32 %v83, %v182
  %v185 = vtanh.pop %v184
  %v186 = vmul.f32 %v185, %v112
  %v187 = vadd.f32 %v186, %v113
  %v188 = vmul.f32 %v187, %v152
  %190 = vrot.lane.b32.xlu0 %v187, 64
  %v191 = vpop.permute.xlu0 %190
  %v193 = vmul.f32 %v187, %v191
  %195 = vrot.lane.b32.xlu0 %v193, 32
  %v196 = vpop.permute.xlu0 %195
  %v198 = vadd.f32 %v188, %v196
  %v199 = vtanh.pop %v198
  %201 = vrot.lane.b32.xlu0 %v199, 64
  %v202 = vpop.permute.xlu0 %201
  %v204 = vmul.f32 %v187, %v202
  %206 = vrot.lane.b32.xlu0 %v204, 32
  %v207 = vpop.permute.xlu0 %206
  %v208 = vsel %vm114, %v207, 0
  %210 = vmatpush.msra.mxu0 0.0
  %211 = vmatpush.msra.mxu0 0.0
  %212 = vmatpush.msra.mxu0 0.0
  %213 = vmatpush.msra.mxu0 0.0
  %214 = vmatpush.msra.mxu0 0.0
  %215 = vmatpush.msra.mxu0 0.0
  %216 = vmatpush.msra.mxu0 0.0
  %217 = vmatpush.msra.mxu0 0.0
  %218 = vmatpush.msra.mxu0 0.0
  %219 = vmatpush.msra.mxu0 0.0
  %220 = vmatpush.msra.mxu0 0.0
  %221 = vmatpush.msra.mxu0 0.0
  %222 = vmatpush.msra.mxu0 %v106
  %223 = vmatpush.msra.mxu0 %v105
  %224 = vmatpush.msra.mxu0 %v104
  %225 = vmatpush.msra.mxu0 %v103
  %226 = vmatmul.f32.gmra.mxu0 %v208
  %v227 = vpop.f32.mrf.mxu0
  %v228 = vadd.f32 0.0, %v227
  %229 = vdwg.mxu0
  %v230 = vadd.f32 %v86, %v228
  %v231 = vtanh.pop %v230
  %v232 = vmul.f32 %v231, %v112
  %v233 = vadd.f32 %v232, %v113
  %v234 = vmul.f32 %v233, %v198
  %236 = vrot.lane.b32.xlu0 %v233, 64
  %v237 = vpop.permute.xlu0 %236
  %v239 = vmul.f32 %v233, %v237
  %241 = vrot.lane.b32.xlu0 %v239, 32
  %v242 = vpop.permute.xlu0 %241
  %v244 = vadd.f32 %v234, %v242
  %v245 = vtanh.pop %v244
  %247 = vrot.lane.b32.xlu0 %v245, 64
  %v248 = vpop.permute.xlu0 %247
  %v250 = vmul.f32 %v233, %v248
  %252 = vrot.lane.b32.xlu0 %v250, 32
  %v253 = vpop.permute.xlu0 %252
  %v254 = vsel %vm114, %v253, 0
  %256 = vmatpush.msra.mxu0 0.0
  %257 = vmatpush.msra.mxu0 0.0
  %258 = vmatpush.msra.mxu0 0.0
  %259 = vmatpush.msra.mxu0 0.0
  %260 = vmatpush.msra.mxu0 0.0
  %261 = vmatpush.msra.mxu0 0.0
  %262 = vmatpush.msra.mxu0 0.0
  %263 = vmatpush.msra.mxu0 0.0
  %264 = vmatpush.msra.mxu0 0.0
  %265 = vmatpush.msra.mxu0 0.0
  %266 = vmatpush.msra.mxu0 0.0
  %267 = vmatpush.msra.mxu0 0.0
  %268 = vmatpush.msra.mxu0 %v106
  %269 = vmatpush.msra.mxu0 %v105
  %270 = vmatpush.msra.mxu0 %v104
  %271 = vmatpush.msra.mxu0 %v103
  %272 = vmatmul.f32.gmra.mxu0 %v254
  %v273 = vpop.f32.mrf.mxu0
  %v274 = vadd.f32 0.0, %v273
  %275 = vdwg.mxu0
  %v276 = vadd.f32 %v89, %v274
  %v277 = vtanh.pop %v276
  %v278 = vmul.f32 %v277, %v112
  %v279 = vadd.f32 %v278, %v113
  %v280 = vmul.f32 %v279, %v244
  %282 = vrot.lane.b32.xlu0 %v279, 64
  %v283 = vpop.permute.xlu0 %282
  %v285 = vmul.f32 %v279, %v283
  %287 = vrot.lane.b32.xlu0 %v285, 32
  %v288 = vpop.permute.xlu0 %287
  %v290 = vadd.f32 %v280, %v288
  %v291 = vtanh.pop %v290
  %293 = vrot.lane.b32.xlu0 %v291, 64
  %v294 = vpop.permute.xlu0 %293
  %v296 = vmul.f32 %v279, %v294
  %298 = vrot.lane.b32.xlu0 %v296, 32
  %v299 = vpop.permute.xlu0 %298
  %v300 = vsel %vm114, %v299, 0
  %302 = vmatpush.msra.mxu0 0.0
  %303 = vmatpush.msra.mxu0 0.0
  %304 = vmatpush.msra.mxu0 0.0
  %305 = vmatpush.msra.mxu0 0.0
  %306 = vmatpush.msra.mxu0 0.0
  %307 = vmatpush.msra.mxu0 0.0
  %308 = vmatpush.msra.mxu0 0.0
  %309 = vmatpush.msra.mxu0 0.0
  %310 = vmatpush.msra.mxu0 0.0
  %311 = vmatpush.msra.mxu0 0.0
  %312 = vmatpush.msra.mxu0 0.0
  %313 = vmatpush.msra.mxu0 0.0
  %314 = vmatpush.msra.mxu0 %v106
  %315 = vmatpush.msra.mxu0 %v105
  %316 = vmatpush.msra.mxu0 %v104
  %317 = vmatpush.msra.mxu0 %v103
  %318 = vmatmul.f32.gmra.mxu0 %v300
  %v319 = vpop.f32.mrf.mxu0
  %v320 = vadd.f32 0.0, %v319
  %321 = vdwg.mxu0
  %v322 = vadd.f32 %v92, %v320
  %v323 = vtanh.pop %v322
  %v324 = vmul.f32 %v323, %v112
  %v325 = vadd.f32 %v324, %v113
  %v326 = vmul.f32 %v325, %v290
  %328 = vrot.lane.b32.xlu0 %v325, 64
  %v329 = vpop.permute.xlu0 %328
  %v331 = vmul.f32 %v325, %v329
  %333 = vrot.lane.b32.xlu0 %v331, 32
  %v334 = vpop.permute.xlu0 %333
  %v336 = vadd.f32 %v326, %v334
  %v337 = vtanh.pop %v336
  %339 = vrot.lane.b32.xlu0 %v337, 64
  %v340 = vpop.permute.xlu0 %339
  %v342 = vmul.f32 %v325, %v340
  %344 = vrot.lane.b32.xlu0 %v342, 32
  %v345 = vpop.permute.xlu0 %344
  %v346 = vsel %vm114, %v345, 0
  %348 = vmatpush.msra.mxu0 0.0
  %349 = vmatpush.msra.mxu0 0.0
  %350 = vmatpush.msra.mxu0 0.0
  %351 = vmatpush.msra.mxu0 0.0
  %352 = vmatpush.msra.mxu0 0.0
  %353 = vmatpush.msra.mxu0 0.0
  %354 = vmatpush.msra.mxu0 0.0
  %355 = vmatpush.msra.mxu0 0.0
  %356 = vmatpush.msra.mxu0 0.0
  %357 = vmatpush.msra.mxu0 0.0
  %358 = vmatpush.msra.mxu0 0.0
  %359 = vmatpush.msra.mxu0 0.0
  %360 = vmatpush.msra.mxu0 %v106
  %361 = vmatpush.msra.mxu0 %v105
  %362 = vmatpush.msra.mxu0 %v104
  %363 = vmatpush.msra.mxu0 %v103
  %364 = vmatmul.f32.gmra.mxu0 %v346
  %v365 = vpop.f32.mrf.mxu0
  %v366 = vadd.f32 0.0, %v365
  %367 = vdwg.mxu0
  %v368 = vadd.f32 %v95, %v366
  %v369 = vtanh.pop %v368
  %v370 = vmul.f32 %v369, %v112
  %v371 = vadd.f32 %v370, %v113
  %v372 = vmul.f32 %v371, %v336
  %374 = vrot.lane.b32.xlu0 %v371, 64
  %v375 = vpop.permute.xlu0 %374
  %v377 = vmul.f32 %v371, %v375
  %379 = vrot.lane.b32.xlu0 %v377, 32
  %v380 = vpop.permute.xlu0 %379
  %v382 = vadd.f32 %v372, %v380
  %v383 = vtanh.pop %v382
  %385 = vrot.lane.b32.xlu0 %v383, 64
  %v386 = vpop.permute.xlu0 %385
  %v388 = vmul.f32 %v371, %v386
  %390 = vrot.lane.b32.xlu0 %v388, 32
  %v391 = vpop.permute.xlu0 %390
  %v392 = vsel %vm114, %v391, 0
  %394 = vmatpush.msra.mxu0 0.0
  %395 = vmatpush.msra.mxu0 0.0
  %396 = vmatpush.msra.mxu0 0.0
  %397 = vmatpush.msra.mxu0 0.0
  %398 = vmatpush.msra.mxu0 0.0
  %399 = vmatpush.msra.mxu0 0.0
  %400 = vmatpush.msra.mxu0 0.0
  %401 = vmatpush.msra.mxu0 0.0
  %402 = vmatpush.msra.mxu0 0.0
  %403 = vmatpush.msra.mxu0 0.0
  %404 = vmatpush.msra.mxu0 0.0
  %405 = vmatpush.msra.mxu0 0.0
  %406 = vmatpush.msra.mxu0 %v106
  %407 = vmatpush.msra.mxu0 %v105
  %408 = vmatpush.msra.mxu0 %v104
  %409 = vmatpush.msra.mxu0 %v103
  %410 = vmatmul.f32.gmra.mxu0 %v392
  %v411 = vpop.f32.mrf.mxu0
  %v412 = vadd.f32 0.0, %v411
  %413 = vdwg.mxu0
  %v414 = vadd.f32 %v98, %v412
  %v415 = vtanh.pop %v414
  %v416 = vmul.f32 %v415, %v112
  %v417 = vadd.f32 %v416, %v113
  %v418 = vmul.f32 %v417, %v382
  %420 = vrot.lane.b32.xlu0 %v417, 64
  %v421 = vpop.permute.xlu0 %420
  %v423 = vmul.f32 %v417, %v421
  %425 = vrot.lane.b32.xlu0 %v423, 32
  %v426 = vpop.permute.xlu0 %425
  %v428 = vadd.f32 %v418, %v426
  %v429 = vtanh.pop %v428
  %431 = vrot.lane.b32.xlu0 %v429, 64
  %v432 = vpop.permute.xlu0 %431
  %v434 = vmul.f32 %v417, %v432
  %436 = vrot.lane.b32.xlu0 %v434, 32
  %v437 = vpop.permute.xlu0 %436
  %v438 = vsel %vm114, %v437, 0
  %440 = vmatpush.msra.mxu0 0.0
  %441 = vmatpush.msra.mxu0 0.0
  %442 = vmatpush.msra.mxu0 0.0
  %443 = vmatpush.msra.mxu0 0.0
  %444 = vmatpush.msra.mxu0 0.0
  %445 = vmatpush.msra.mxu0 0.0
  %446 = vmatpush.msra.mxu0 0.0
  %447 = vmatpush.msra.mxu0 0.0
  %448 = vmatpush.msra.mxu0 0.0
  %449 = vmatpush.msra.mxu0 0.0
  %450 = vmatpush.msra.mxu0 0.0
  %451 = vmatpush.msra.mxu0 0.0
  %452 = vmatpush.msra.mxu0 %v106
  %453 = vmatpush.msra.mxu0 %v105
  %454 = vmatpush.msra.mxu0 %v104
  %455 = vmatpush.msra.mxu0 %v103
  %456 = vmatmul.f32.gmra.mxu0 %v438
  %v457 = vpop.f32.mrf.mxu0
  %v458 = vadd.f32 0.0, %v457
  %459 = vdwg.mxu0
  %v460 = vadd.f32 %v101, %v458
  %v461 = vtanh.pop %v460
  %v462 = vmul.f32 %v461, %v112
  %v463 = vadd.f32 %v462, %v113
  %v464 = vmul.f32 %v463, %v428
  %466 = vrot.lane.b32.xlu0 %v463, 64
  %v467 = vpop.permute.xlu0 %466
  %v469 = vmul.f32 %v463, %v467
  %471 = vrot.lane.b32.xlu0 %v469, 32
  %v472 = vpop.permute.xlu0 %471
  %v474 = vadd.f32 %v464, %v472
  %v475 = vtanh.pop %v474
  %477 = vrot.lane.b32.xlu0 %v475, 64
  %v478 = vpop.permute.xlu0 %477
  %v480 = vmul.f32 %v463, %v478
  %v481 = vld [vmem:[%s4] sm:$0xff]
  %v482 = vld [vmem:[%s4 + $0x8] sm:$0xff]
  %v483 = vld [vmem:[%s4 + $0x10] sm:$0xff]
  %v484 = vld [vmem:[%s4 + $0x18] sm:$0xff]
  %v485 = vld [vmem:[%s5] sm:$0x1]
  %v487 = vperm.slane %v485, 0
  %490 = vrot.lane.b32.xlu0 %v480, 32
  %v491 = vpop.permute.xlu0 %490
  %v492 = vsel %vm114, %v491, 0
  %494 = vmatpush.msra.mxu0 0.0
  %495 = vmatpush.msra.mxu0 0.0
  %496 = vmatpush.msra.mxu0 0.0
  %497 = vmatpush.msra.mxu0 0.0
  %498 = vmatpush.msra.mxu0 0.0
  %499 = vmatpush.msra.mxu0 0.0
  %500 = vmatpush.msra.mxu0 0.0
  %501 = vmatpush.msra.mxu0 0.0
  %502 = vmatpush.msra.mxu0 0.0
  %503 = vmatpush.msra.mxu0 0.0
  %504 = vmatpush.msra.mxu0 0.0
  %505 = vmatpush.msra.mxu0 0.0
  %506 = vmatpush.msra.mxu0 %v484
  %507 = vmatpush.msra.mxu0 %v483
  %508 = vmatpush.msra.mxu0 %v482
  %509 = vmatpush.msra.mxu0 %v481
  %510 = vmatmul.f32.gmra.mxu0 %v492
  %v511 = vpop.f32.mrf.mxu0
  %v512 = vadd.f32 %v487, %v511
  %513 = vdwg.mxu0
  %v514 = vxor.u32 %v512, 2147483648
  %v515 = vmul.f32 %v514, 1.442695
  %v516 = vpow.pop %v515
  %v517 = vadd.f32 %v516, 1.0
  %v518 = vrcp.pop %v517
  %v519 = vmul.f32 %v517, %v518
  %v520 = vsub.f32 1.0, %v519
  %v521 = vmul.f32 %v518, %v520
  %v522 = vadd.f32 %v518, %v521
  %vm523 = vweird.f32 %v517
  %vm524 = vweird.f32 %v518
  %vm525 = vmor %vm523, %vm524
  %v526 = vsel %vm525, %v518, %v522
  %v527 = vand.u32 2147483647, %v517
  %vm528 = vcmp.eq.f32.partialorder %v527, 8.507059e+37
  %v529 = vand.u32 %v517, 2147483648
  %v530 = vor.u32 1.1754944e-38, %v529
  %v531 = vsel %vm528, %v530, %v526
  %v532 = vmul.f32 1.0, %v531
  %vm533 = vcmask 31744
  %534 = vst.msk [vmem:[%s6] sm:$0xff] %vm533, %v532
  // Predicated region
  $region26: #{lstm_classifier_forward.1} parent=0 // pred_check
    _
  $region27: #{lstm_classifier_forward.1} parent=0 // pred_check_branch
    %536 = sbr.rel (0) target = $region29
  $region28: #{lstm_classifier_forward.1} parent=0 // pred_region
    _
  $region29: #{lstm_classifier_forward.1} parent=0 // pred_fallthru
    _
  // Predicated region
  $region30: #{lstm_classifier_forward.1} parent=0 // pred_check
    _
  $region31: #{lstm_classifier_forward.1} parent=0 // pred_check_branch
    %538 = sbr.rel (0) target = $region33
  $region32: #{lstm_classifier_forward.1} parent=0 // pred_region
    _
  $region33: #{lstm_classifier_forward.1} parent=0 // pred_fallthru
    _

</llo_original>
